<compile_context>
chip_gen: v7x
topology: tpu7x:2x2x1
jax: 0.10.0
libtpu: 0.0.40
codegen_flags: <defaults>
</compile_context>

<pallas_src>
import functools
import math

import jax
import jax.numpy as jnp
from jax.experimental import pallas as pl
from jax.experimental.pallas import tpu as pltpu


def _pinn_kernel(x_ref, t_ref, wsmall_ref, w2t_ref, b3_ref, o_ref, *,
                 hidden_dtype):
    x = x_ref[...]                              # (1, tile_n) lane-dense row, f32
    t = t_ref[...]                              # (1, tile_n) lane-dense row, f32

    # Packed small-weight slab: columns = [w1_x, w1_t, b1, b2, w3]  (all (64, 1))
    w1x = wsmall_ref[:, 0:1]
    w1t = wsmall_ref[:, 1:2]
    b1 = wsmall_ref[:, 2:3]
    b2 = wsmall_ref[:, 3:4]
    w3 = wsmall_ref[:, 4:5]

    xh = x.astype(hidden_dtype)
    th = t.astype(hidden_dtype)

    # Layer 1 (2 -> 64): h1 = tanh(W1^T @ [x; t] + b1^T) expressed as a lane
    # broadcast over the batch (no matmul, no concat).
    h1 = jnp.tanh(w1x.astype(hidden_dtype) * xh
                  + w1t.astype(hidden_dtype) * th
                  + b1.astype(hidden_dtype))                     # (64, tile_n)

    # Layer 2 (64 -> 64) on the MXU: explicit bf16 operands, f32 accumulate.
    h2 = jnp.dot(w2t_ref[...].astype(jnp.bfloat16),
                 h1.astype(jnp.bfloat16),
                 preferred_element_type=jnp.float32)             # (64, tile_n) f32
    h2 = jnp.tanh((h2 + b2).astype(hidden_dtype))                # (64, tile_n)

    # Layer 3 (64 -> 1): VALU per-sublane scale + sublane reduce (no M=1 MXU pass).
    y = jnp.sum(w3 * h2.astype(jnp.float32), axis=0, keepdims=True)  # (1, tile_n)
    y = y + b3_ref[0]

    # PINN ansatz on the un-broadcast (1, tile_n) rows (sin computed once/point).
    o_ref[...] = x * (1.0 - x) * t * y + (1.0 - t) * jnp.sin(jnp.pi * x)


def unet_pinn_forward(x, t, params, *, tile_n=2048, hidden_dtype=jnp.float32):
    """x, t: (N, 1) float32.  Returns (N, 1) float32.

    hidden_dtype=jnp.bfloat16 is recommended on v6e/v7x (bf16 EUP/VALU);
    keep the default f32 on v5e.
    """
    w1, b1, w2, b2, w3, b3 = params
    N = x.shape[0]
    assert tile_n % 128 == 0, "tile_n must be lane-aligned (multiple of 128)"

    n_pad = pl.cdiv(N, tile_n) * tile_n
    grid = (n_pad // tile_n,)

    # Two separate lane-dense rows (no concat); zero-pad only if needed.
    # Zero-padded tail: x=t=0 -> ansatz is exactly 0 there, dropped by final slice.
    xr = x.reshape(1, N)
    tr = t.reshape(1, N)
    if n_pad != N:
        xr = jnp.pad(xr, ((0, 0), (0, n_pad - N)))
        tr = jnp.pad(tr, ((0, 0), (0, n_pad - N)))

    # One packed (64, 5) slab for all tiny per-feature weights (single VMEM tile,
    # single DMA descriptor) + the resident (64, 64) W2^T tile + b3 scalar in SMEM.
    wsmall = jnp.concatenate([
        w1[0].reshape(64, 1),      # W1^T column for x
        w1[1].reshape(64, 1),      # W1^T column for t
        b1.reshape(64, 1),         # b1^T
        b2.reshape(64, 1),         # b2^T
        w3.reshape(64, 1),         # w3 column
    ], axis=1).astype(jnp.float32)
    w2t = w2.T                     # (64, 64)
    b3s = b3.reshape(1).astype(jnp.float32)

    resident = lambda i: (0, 0)    # same block every grid step -> stays in VMEM

    kernel = functools.partial(_pinn_kernel, hidden_dtype=hidden_dtype)

    out = pl.pallas_call(
        kernel,
        out_shape=jax.ShapeDtypeStruct((1, n_pad), jnp.float32),
        grid_spec=pltpu.PrefetchScalarGridSpec(
            num_scalar_prefetch=0,
            grid=grid,
            in_specs=[
                pl.BlockSpec((1, tile_n), lambda i: (0, i)),          # x row
                pl.BlockSpec((1, tile_n), lambda i: (0, i)),          # t row
                pl.BlockSpec((64, 5), resident),                      # packed weights
                pl.BlockSpec((64, 64), resident),                     # W2^T
                pl.BlockSpec(memory_space=pltpu.MemorySpace.SMEM),    # b3 scalar
            ],
            out_specs=pl.BlockSpec((1, tile_n), lambda i: (0, i)),
        ),
        compiler_params=pltpu.CompilerParams(
            dimension_semantics=("parallel",)),
    )(xr, tr, wsmall, w2t, b3s)

    return out[0, :N].reshape(N, 1)


def init_params(key):
    """Deterministic init mimicking nn.Linear's U(-1/sqrt(fan_in), 1/sqrt(fan_in))."""
    ks = jax.random.split(key, 6)

    def linear(kw, kb, fan_in, fan_out):
        bound = 1.0 / math.sqrt(fan_in)
        w = jax.random.uniform(kw, (fan_in, fan_out), jnp.float32, -bound, bound)
        b = jax.random.uniform(kb, (1, fan_out), jnp.float32, -bound, bound)
        return w, b

    w1, b1 = linear(ks[0], ks[1], 2, 64)
    w2, b2 = linear(ks[2], ks[3], 64, 64)
    w3, b3 = linear(ks[4], ks[5], 64, 1)
    return (w1, b1, w2, b2, w3, b3)


def reference_forward(x, t, params):
    """Pure-JAX mirror of the PyTorch module (full-precision matmuls)."""
    w1, b1, w2, b2, w3, b3 = params
    hi = jax.lax.Precision.HIGHEST
    xt = jnp.concatenate([x, t], axis=1)
    h = jnp.tanh(jnp.dot(xt, w1, precision=hi) + b1)
    h = jnp.tanh(jnp.dot(h, w2, precision=hi) + b2)
    y = jnp.dot(h, w3, precision=hi) + b3
    return x * (1.0 - x) * t * y + (1.0 - t) * jnp.sin(jnp.pi * x)


if __name__ == "__main__":
    key = jax.random.PRNGKey(0)
    kp, kx, kt = jax.random.split(key, 3)

    params = init_params(kp)

    N = 1024  # collocation points (small demo)
    x = jax.random.uniform(kx, (N, 1), jnp.float32)
    t = jax.random.uniform(kt, (N, 1), jnp.float32)

    # tile_n=512 -> 2 lane-dense grid steps (keeps both v7x TensorCores busy);
    # for production collocation counts sweep tile_n upward (2048 -> 8192).
    out = unet_pinn_forward(x, t, params, tile_n=512)
    out = jax.block_until_ready(out)

    ref = reference_forward(x, t, params)
    assert out.shape == (N, 1)
    err = float(jnp.max(jnp.abs(out - ref)))
    # Layer 2 runs in bf16 on the MXU (same as JAX's TPU default) -> ~1e-3 level
    # differences vs a full-f32 reference are expected.
    assert err < 1e-2, f"mismatch vs reference: max abs err {err}"

    print("KERNEL_OK")
</pallas_src>

<mosaic_0001>
module attributes {stable_mosaic.version = 11 : i64} {
  func.func @_pinn_kernel(%arg0: i32, %arg1: memref<1x512xf32, #tpu.memory_space<vmem>>, %arg2: memref<1x512xf32, #tpu.memory_space<vmem>>, %arg3: memref<64x5xf32, #tpu.memory_space<vmem>>, %arg4: memref<64x64xf32, #tpu.memory_space<vmem>>, %arg5: memref<1xf32, #tpu.memory_space<smem>>, %arg6: memref<1x512xf32, #tpu.memory_space<vmem>>) attributes {dimension_semantics = [#tpu.dimension_semantics<parallel>], iteration_bounds = array<i64: 2>, scalar_prefetch = 0 : i64, scratch_operands = 0 : i64, tpu.core_type = #tpu.core_type<tc>, window_params = [{transform_indices = @transform_0, window_bounds = array<i64: 1, 512>}, {transform_indices = @transform_1, window_bounds = array<i64: 1, 512>}, {pipeline_mode = #tpu.pipeline_mode<synchronous>, transform_indices = @transform_2, window_bounds = array<i64: 64, 5>}, {pipeline_mode = #tpu.pipeline_mode<synchronous>, transform_indices = @transform_3, window_bounds = array<i64: 64, 64>}, {transform_indices = @transform_4, window_bounds = array<i64: 1>}, {transform_indices = @transform_5, window_bounds = array<i64: 1, 512>}]} {
    %c0 = arith.constant 0 : index
    %c0_0 = arith.constant 0 : index
    %0 = vector.load %arg1[%c0, %c0_0] : memref<1x512xf32, #tpu.memory_space<vmem>>, vector<1x512xf32>
    %c0_1 = arith.constant 0 : index
    %c0_2 = arith.constant 0 : index
    %1 = vector.load %arg2[%c0_1, %c0_2] : memref<1x512xf32, #tpu.memory_space<vmem>>, vector<1x512xf32>
    %c0_3 = arith.constant 0 : index
    %c0_4 = arith.constant 0 : index
    %2 = vector.load %arg3[%c0_3, %c0_4] : memref<64x5xf32, #tpu.memory_space<vmem>>, vector<64x1xf32>
    %c0_5 = arith.constant 0 : index
    %c1 = arith.constant 1 : index
    %3 = vector.load %arg3[%c0_5, %c1] : memref<64x5xf32, #tpu.memory_space<vmem>>, vector<64x1xf32>
    %c0_6 = arith.constant 0 : index
    %c2 = arith.constant 2 : index
    %4 = vector.load %arg3[%c0_6, %c2] : memref<64x5xf32, #tpu.memory_space<vmem>>, vector<64x1xf32>
    %c0_7 = arith.constant 0 : index
    %c3 = arith.constant 3 : index
    %5 = vector.load %arg3[%c0_7, %c3] : memref<64x5xf32, #tpu.memory_space<vmem>>, vector<64x1xf32>
    %c0_8 = arith.constant 0 : index
    %c4 = arith.constant 4 : index
    %6 = vector.load %arg3[%c0_8, %c4] : memref<64x5xf32, #tpu.memory_space<vmem>>, vector<64x1xf32>
    %7 = vector.broadcast %2 : vector<64x1xf32> to vector<64x512xf32>
    %8 = vector.broadcast %0 : vector<1x512xf32> to vector<64x512xf32>
    %9 = arith.mulf %7, %8 : vector<64x512xf32>
    %10 = vector.broadcast %3 : vector<64x1xf32> to vector<64x512xf32>
    %11 = vector.broadcast %1 : vector<1x512xf32> to vector<64x512xf32>
    %12 = arith.mulf %10, %11 : vector<64x512xf32>
    %13 = arith.addf %9, %12 : vector<64x512xf32>
    %14 = vector.broadcast %4 : vector<64x1xf32> to vector<64x512xf32>
    %15 = arith.addf %13, %14 : vector<64x512xf32>
    %16 = math.tanh %15 : vector<64x512xf32>
    %c0_9 = arith.constant 0 : index
    %c0_10 = arith.constant 0 : index
    %17 = vector.load %arg4[%c0_9, %c0_10] : memref<64x64xf32, #tpu.memory_space<vmem>>, vector<64x64xf32>
    %18 = arith.truncf %17 : vector<64x64xf32> to vector<64x64xbf16>
    %19 = arith.truncf %16 : vector<64x512xf32> to vector<64x512xbf16>
    %cst = arith.constant dense<0.000000e+00> : vector<64x512xf32>
    %20 = tpu.matmul %18, %19, %cst {dimension_numbers = #tpu.dot_dimension_numbers<[1], [0], [0], [1], [0, 0, 1, 1], [], []>} : vector<64x64xbf16>, vector<64x512xbf16>, vector<64x512xf32> -> vector<64x512xf32>
    %21 = vector.broadcast %5 : vector<64x1xf32> to vector<64x512xf32>
    %22 = arith.addf %20, %21 : vector<64x512xf32>
    %23 = math.tanh %22 : vector<64x512xf32>
    %24 = vector.broadcast %6 : vector<64x1xf32> to vector<64x512xf32>
    %25 = arith.mulf %24, %23 : vector<64x512xf32>
    %cst_11 = arith.constant dense<0.000000e+00> : vector<512xf32>
    %26 = vector.multi_reduction <add>, %25, %cst_11 [0] : vector<64x512xf32> to vector<512xf32>
    %27 = vector.shape_cast %26 : vector<512xf32> to vector<1x512xf32>
    %c0_12 = arith.constant 0 : index
    %28 = memref.load %arg5[%c0_12] : memref<1xf32, #tpu.memory_space<smem>>
    %29 = vector.broadcast %28 : f32 to vector<1x512xf32>
    %30 = arith.addf %27, %29 : vector<1x512xf32>
    %cst_13 = arith.constant 1.000000e+00 : f32
    %31 = vector.broadcast %cst_13 : f32 to vector<1x512xf32>
    %32 = arith.subf %31, %0 : vector<1x512xf32>
    %33 = arith.mulf %0, %32 : vector<1x512xf32>
    %34 = arith.mulf %33, %1 : vector<1x512xf32>
    %35 = arith.mulf %34, %30 : vector<1x512xf32>
    %cst_14 = arith.constant 1.000000e+00 : f32
    %36 = vector.broadcast %cst_14 : f32 to vector<1x512xf32>
    %37 = arith.subf %36, %1 : vector<1x512xf32>
    %cst_15 = arith.constant 3.14159274 : f32
    %38 = vector.broadcast %cst_15 : f32 to vector<1x512xf32>
    %39 = arith.mulf %38, %0 : vector<1x512xf32>
    %40 = math.sin %39 : vector<1x512xf32>
    %41 = arith.mulf %37, %40 : vector<1x512xf32>
    %42 = arith.addf %35, %41 : vector<1x512xf32>
    %c0_16 = arith.constant 0 : index
    %c0_17 = arith.constant 0 : index
    %43 = vector.load %arg6[%c0_16, %c0_17] : memref<1x512xf32, #tpu.memory_space<vmem>>, vector<1x512xf32>
    tpu.vector_store %arg6[%c0_16, %c0_17], %42 {strides = array<i32>} : memref<1x512xf32, #tpu.memory_space<vmem>>, vector<1x512xf32>,
    return
  }
  func.func @transform_0(%arg0: i32) -> (i32, i32) {
    %c0_i32 = arith.constant 0 : i32
    %c0_i32_0 = arith.constant 0 : i32
    return %c0_i32, %arg0 : i32, i32
  }
  func.func @transform_1(%arg0: i32) -> (i32, i32) {
    %c0_i32 = arith.constant 0 : i32
    %c0_i32_0 = arith.constant 0 : i32
    return %c0_i32, %arg0 : i32, i32
  }
  func.func @transform_2(%arg0: i32) -> (i32, i32) {
    %c0_i32 = arith.constant 0 : i32
    %c0_i32_0 = arith.constant 0 : i32
    %c0_i32_1 = arith.constant 0 : i32
    return %c0_i32, %c0_i32_0 : i32, i32
  }
  func.func @transform_3(%arg0: i32) -> (i32, i32) {
    %c0_i32 = arith.constant 0 : i32
    %c0_i32_0 = arith.constant 0 : i32
    %c0_i32_1 = arith.constant 0 : i32
    return %c0_i32, %c0_i32_0 : i32, i32
  }
  func.func @transform_4(%arg0: i32) -> i32 {
    %c0_i32 = arith.constant 0 : i32
    %c0_i32_0 = arith.constant 0 : i32
    return %c0_i32 : i32
  }
  func.func @transform_5(%arg0: i32) -> (i32, i32) {
    %c0_i32 = arith.constant 0 : i32
    %c0_i32_0 = arith.constant 0 : i32
    return %c0_i32, %arg0 : i32, i32
  }
}

</mosaic_0001>

<llo_original>
// kernel: tpu_custom_call.1
$region0: #{tpu_custom_call.1}
  #allocation0 [shape = 'u32[]', space=smem, size = 0x4, offset = 0x4, fixed_abs, tag = 'smem constant byte address 0x4 - core index']
  #allocation1 [shape = 'u32[144,128]{1,0:T(1,128)}', space=vmem, size = 0x12000, scoped, tag = 'internal scratch']
  #allocation2 [shape = 'f32[1]{0:T(128)S(6)}', space=smem, size = 0x200, scoped, tag = 'scoped memory for tpu_custom_call.1']
  %s0 = inlined_call_operand.vmem [shape: f32[1,1024], index: 0, kind: input, shape index: {}]
  %s1 = inlined_call_operand.vmem [shape: f32[1,1024], index: 1, kind: input, shape index: {}]
  %s2 = inlined_call_operand.vmem [shape: f32[64,5], index: 2, kind: input, shape index: {}]
  %s3 = inlined_call_operand.vmem [shape: f32[64,64], index: 3, kind: input, shape index: {}]
  %s4 = inlined_call_operand.<no memory space> [shape: f32[1], index: 4, kind: input, shape index: {}]
  %s5 = inlined_call_operand.hbm [shape: f32[1,1024], index: 5, kind: output, shape index: {}]
  %s6 = sld [smem:[#allocation0]]
  $region53: #{tpu_custom_call.1} parent=0
    _
  %s8 = ssub.s32 1, %s6
  %s9 = scalar_select 0, %s8, %s6
  %10 = sst [smem:[#allocation2]] %s4
  $region1: #{tpu_custom_call.1} parent=0
    #allocation3 [shape = 'u8[4096]{0}', space=vmem, size = 0x1000, scoped, tag = 'output window, operand 0']
    #allocation4 [shape = 's32[2]{0}', space=sflag, size = 0x8, scoped, tag = 'scoped memory for tpu_custom_call.1']
    %11 = vsyncpa [#allocation4], 0
    %s12 = scalar_lea.sflag [#allocation4], 1
    %13 = vsyncpa %s12, 0
    loop: start=0, step=1, limit=4
    $region2: #{tpu_custom_call.1} parent=1 // loop_pre_header
      _
    $region3: #{tpu_custom_call.1} parent=1 // loop_header
      %s15 = sphi 0, %s19
      %p16 = scmp.ge.s32.totalorder %s15, 4
      %s25 = sphi 0, %s27
      %s28 = sphi 0, %s25
      %s29 = sphi 0, %s28
      %s45 = sphi 0, %s29
      %s51 = sphi 0, %s53
      %s54 = sphi 0, %s51
      %s55 = sphi 0, %s54
      %s71 = sphi 0, %s55
      %s75 = sphi 0, %s75
      %s77 = sphi 0, %s75
      %s78 = sphi 0, %s77
      %s92 = sphi 0, %s78
      %s96 = sphi 0, %s96
      %s98 = sphi 0, %s96
      %s99 = sphi 0, %s98
      %s113 = sphi 0, %s99
      %s117 = sphi 0, %s117
      %s119 = sphi 0, %s117
      %s120 = sphi 0, %s119
      %s134 = sphi 0, %s120
      %s140 = sphi 0, %s142
      %s143 = sphi 0, %s140
      %s144 = sphi 0, %s143
      %s160 = sphi 0, %s144
    $region4: #{tpu_custom_call.1} parent=1 // loop_header_branch
      %18 = sbr.rel (%p16) target = $region8
    $region5: #{tpu_custom_call.1} parent=1 // loop_body
      %s20 = ssub.s32 %s15, 1
      %s21 = ssub.s32 %s15, 2
      %s22 = sadd.s32 %s15, 1
      %s23 = ssub.s32 %s15, %s22
      %p24 = scmp.eq.s32.totalorder %s23, 0
      %s26 = sadd.s32 %s25, 1
      %s27 = scalar_select %p24, %s25, %s26
      %p30 = pneg %p24
      %p31 = scmp.eq.s32.totalorder %s15, 1
      %p32 = por %p30, %p31
      %p33 = scmp.ne.s32.totalorder %s25, %s28
      %p34 = scmp.eq.s32.totalorder %s15, 0
      %p35 = por %p33, %p34
      %p36 = scmp.ne.s32.totalorder %s25, %s28
      %p37 = scmp.eq.s32.totalorder %s20, 1
      %p38 = por %p36, %p37
      %p39 = scmp.ne.s32.totalorder %s28, %s29
      %p40 = scmp.eq.s32.totalorder %s20, 0
      %p41 = por %p39, %p40
      %p42 = scmp.ne.s32.totalorder %s28, %s29
      %p43 = scmp.eq.s32.totalorder %s21, 1
      %p44 = por %p42, %p43
      %p46 = scmp.ne.s32.totalorder %s29, %s45
      %p47 = scmp.eq.s32.totalorder %s21, 0
      %p48 = por %p46, %p47
      %s49 = ssub.s32 %s15, %s22
      %p50 = scmp.eq.s32.totalorder %s49, 0
      %s52 = sadd.s32 %s51, 1
      %s53 = scalar_select %p50, %s51, %s52
      %p56 = pneg %p50
      %p57 = scmp.eq.s32.totalorder %s15, 1
      %p58 = por %p56, %p57
      %p59 = scmp.ne.s32.totalorder %s51, %s54
      %p60 = scmp.eq.s32.totalorder %s15, 0
      %p61 = por %p59, %p60
      %p62 = scmp.ne.s32.totalorder %s51, %s54
      %p63 = scmp.eq.s32.totalorder %s20, 1
      %p64 = por %p62, %p63
      %p65 = scmp.ne.s32.totalorder %s54, %s55
      %p66 = scmp.eq.s32.totalorder %s20, 0
      %p67 = por %p65, %p66
      %p68 = scmp.ne.s32.totalorder %s54, %s55
      %p69 = scmp.eq.s32.totalorder %s21, 1
      %p70 = por %p68, %p69
      %p72 = scmp.ne.s32.totalorder %s55, %s71
      %p73 = scmp.eq.s32.totalorder %s21, 0
      %p74 = por %p72, %p73
      %s76 = sadd.s32 %s75, 1
      %p79 = scmp.eq.s32.totalorder %s15, 1
      %p80 = scmp.ne.s32.totalorder %s75, %s77
      %p81 = scmp.eq.s32.totalorder %s15, 0
      %p82 = por %p80, %p81
      %p83 = scmp.ne.s32.totalorder %s75, %s77
      %p84 = scmp.eq.s32.totalorder %s20, 1
      %p85 = por %p83, %p84
      %p86 = scmp.ne.s32.totalorder %s77, %s78
      %p87 = scmp.eq.s32.totalorder %s20, 0
      %p88 = por %p86, %p87
      %p89 = scmp.ne.s32.totalorder %s77, %s78
      %p90 = scmp.eq.s32.totalorder %s21, 1
      %p91 = por %p89, %p90
      %p93 = scmp.ne.s32.totalorder %s78, %s92
      %p94 = scmp.eq.s32.totalorder %s21, 0
      %p95 = por %p93, %p94
      %s97 = sadd.s32 %s96, 1
      %p100 = scmp.eq.s32.totalorder %s15, 1
      %p101 = scmp.ne.s32.totalorder %s96, %s98
      %p102 = scmp.eq.s32.totalorder %s15, 0
      %p103 = por %p101, %p102
      %p104 = scmp.ne.s32.totalorder %s96, %s98
      %p105 = scmp.eq.s32.totalorder %s20, 1
      %p106 = por %p104, %p105
      %p107 = scmp.ne.s32.totalorder %s98, %s99
      %p108 = scmp.eq.s32.totalorder %s20, 0
      %p109 = por %p107, %p108
      %p110 = scmp.ne.s32.totalorder %s98, %s99
      %p111 = scmp.eq.s32.totalorder %s21, 1
      %p112 = por %p110, %p111
      %p114 = scmp.ne.s32.totalorder %s99, %s113
      %p115 = scmp.eq.s32.totalorder %s21, 0
      %p116 = por %p114, %p115
      %s118 = sadd.s32 %s117, 1
      %p121 = scmp.eq.s32.totalorder %s15, 1
      %p122 = scmp.ne.s32.totalorder %s117, %s119
      %p123 = scmp.eq.s32.totalorder %s15, 0
      %p124 = por %p122, %p123
      %p125 = scmp.ne.s32.totalorder %s117, %s119
      %p126 = scmp.eq.s32.totalorder %s20, 1
      %p127 = por %p125, %p126
      %p128 = scmp.ne.s32.totalorder %s119, %s120
      %p129 = scmp.eq.s32.totalorder %s20, 0
      %p130 = por %p128, %p129
      %p131 = scmp.ne.s32.totalorder %s119, %s120
      %p132 = scmp.eq.s32.totalorder %s21, 1
      %p133 = por %p131, %p132
      %p135 = scmp.ne.s32.totalorder %s120, %s134
      %p136 = scmp.eq.s32.totalorder %s21, 0
      %p137 = por %p135, %p136
      %s138 = ssub.s32 %s15, %s22
      %p139 = scmp.eq.s32.totalorder %s138, 0
      %s141 = sadd.s32 %s140, 1
      %s142 = scalar_select %p139, %s140, %s141
      %p145 = pneg %p139
      %p146 = scmp.eq.s32.totalorder %s15, 1
      %p147 = por %p145, %p146
      %p148 = scmp.ne.s32.totalorder %s140, %s143
      %p149 = scmp.eq.s32.totalorder %s15, 0
      %p150 = por %p148, %p149
      %p151 = scmp.ne.s32.totalorder %s140, %s143
      %p152 = scmp.eq.s32.totalorder %s20, 1
      %p153 = por %p151, %p152
      %p154 = scmp.ne.s32.totalorder %s143, %s144
      %p155 = scmp.eq.s32.totalorder %s20, 0
      %p156 = por %p154, %p155
      %p157 = scmp.ne.s32.totalorder %s143, %s144
      %p158 = scmp.eq.s32.totalorder %s21, 1
      %p159 = por %p157, %p158
      %p161 = scmp.ne.s32.totalorder %s144, %s160
      %p162 = scmp.eq.s32.totalorder %s21, 0
      %p163 = por %p161, %p162
      %p164 = scmp.le.s32.totalorder 1, %s15
      %p165 = scmp.lt.s32.totalorder %s15, 3
      %p166 = pnand %p164, %p165
      %p167 = pneg %p166
      // Predicated region
      $region9: #{tpu_custom_call.1} parent=5 // pred_check
        _
      $region10: #{tpu_custom_call.1} parent=5 // pred_check_branch
        %169 = sbr.rel (%p166) target = $region12
      $region11: #{tpu_custom_call.1} parent=5 // pred_region
        %s170 = ssub.s32 %s15, 1
        // Predicated region
        $region13: #{tpu_custom_call.1} parent=11 // pred_check
          %p171 = pneg %p88
        $region14: #{tpu_custom_call.1} parent=11 // pred_check_branch
          %173 = sbr.rel (%p171) target = $region16
        $region15: #{tpu_custom_call.1} parent=11 // pred_region
          _
        $region16: #{tpu_custom_call.1} parent=11 // pred_fallthru
          _
        // Predicated region
        $region17: #{tpu_custom_call.1} parent=11 // pred_check
          %p174 = pneg %p109
        $region18: #{tpu_custom_call.1} parent=11 // pred_check_branch
          %176 = sbr.rel (%p174) target = $region20
        $region19: #{tpu_custom_call.1} parent=11 // pred_region
          _
        $region20: #{tpu_custom_call.1} parent=11 // pred_fallthru
          _
        // Predicated region
        $region21: #{tpu_custom_call.1} parent=11 // pred_check
          %p177 = pneg %p130
        $region22: #{tpu_custom_call.1} parent=11 // pred_check_branch
          %179 = sbr.rel (%p177) target = $region24
        $region23: #{tpu_custom_call.1} parent=11 // pred_region
          _
        $region24: #{tpu_custom_call.1} parent=11 // pred_fallthru
          _
      $region12: #{tpu_custom_call.1} parent=5 // pred_fallthru
        _
      %p180 = scmp.lt.s32.totalorder %s15, 2
      // Predicated region
      $region25: #{tpu_custom_call.1} parent=5 // pred_check
        %p181 = pneg %p180
      $region26: #{tpu_custom_call.1} parent=5 // pred_check_branch
        %183 = sbr.rel (%p181) target = $region28
      $region27: #{tpu_custom_call.1} parent=5 // pred_region
        // Predicated region
        $region29: #{tpu_custom_call.1} parent=27 // pred_check
          %p184 = pneg %p35
        $region30: #{tpu_custom_call.1} parent=27 // pred_check_branch
          %186 = sbr.rel (%p184) target = $region32
        $region31: #{tpu_custom_call.1} parent=27 // pred_region
          %s187 = smul.u32 4, %s15
          %p188 = scmp.lt.s32.totalorder %s187, 7
          %s189 = scalar_select %p188, %s187, 7
          %s190 = scalar_lea.vmem %s0, %s189
          %s191 = smul.u32 4, %s15
        $region32: #{tpu_custom_call.1} parent=27 // pred_fallthru
          _
        // Predicated region
        $region33: #{tpu_custom_call.1} parent=27 // pred_check
          %p192 = pneg %p61
        $region34: #{tpu_custom_call.1} parent=27 // pred_check_branch
          %194 = sbr.rel (%p192) target = $region36
        $region35: #{tpu_custom_call.1} parent=27 // pred_region
          %s195 = smul.u32 4, %s15
          %p196 = scmp.lt.s32.totalorder %s195, 7
          %s197 = scalar_select %p196, %s195, 7
          %s198 = scalar_lea.vmem %s1, %s197
          %s199 = smul.u32 4, %s15
        $region36: #{tpu_custom_call.1} parent=27 // pred_fallthru
          _
      $region28: #{tpu_custom_call.1} parent=5 // pred_fallthru
        _
      %p200 = scmp.le.s32.totalorder 1, %s15
      %p201 = scmp.lt.s32.totalorder %s15, 3
      %p202 = pnand %p200, %p201
      %p203 = pneg %p202
      // Predicated region
      $region37: #{tpu_custom_call.1} parent=5 // pred_check
        _
      $region38: #{tpu_custom_call.1} parent=5 // pred_check_branch
        %205 = sbr.rel (%p202) target = $region40
      $region39: #{tpu_custom_call.1} parent=5 // pred_region
        %s206 = ssub.s32 %s15, 1
        %s207 = smul.u32 4, %s20
        %p208 = scmp.lt.s32.totalorder %s207, 7
        %s209 = scalar_select %p208, %s207, 7
        %s210 = scalar_lea.vmem %s0, %s209
        %p211 = pneg %p41
        %p212 = pneg %p38
        %s213 = smul.u32 4, %s20
        %p214 = scmp.lt.s32.totalorder %s213, 7
        %s215 = scalar_select %p214, %s213, 7
        %s216 = scalar_lea.vmem %s1, %s215
        %p217 = pneg %p67
        %p218 = pneg %p64
        %p219 = pneg %p88
        %p220 = pneg %p85
        %p221 = pneg %p109
        %p222 = pneg %p106
        %p223 = pneg %p130
        %p224 = pneg %p127
        %p225 = pneg %p156
        %p226 = pneg %p153
        %s227 = sand.u32 %s143, 1
        %s228 = scalar_lea.sflag [#allocation4], %s227
        %s229 = sand.u32 %s143, 1
        %s230 = smul.addr %s229, 4
        %s231 = scalar_lea.vmem [#allocation3], %s230
        %s232 = smul.u32 4, %s20
        %p233 = scmp.lt.s32.totalorder %s232, 7
        %s234 = scalar_select %p233, %s232, 7
        %s235 = scalar_lea.vmem %s0, %s234
        %s236 = smul.u32 4, %s20
        %s237 = smul.u32 4, %s20
        %p238 = scmp.lt.s32.totalorder %s237, 7
        %s239 = scalar_select %p238, %s237, 7
        %s240 = scalar_lea.vmem %s1, %s239
        %s241 = smul.u32 4, %s20
        %s242 = smul.u32 4, %s20
        %v244 = vld [vmem:[%s235] sm:$0xf]
        %v245 = vld [vmem:[%s240] sm:$0xf]
        %v246 = vld [vmem:[%s2] sm:$0xff]
        %v247 = vld [vmem:[%s2 + $0x8] sm:$0xff]
        %v248 = vld [vmem:[%s2 + $0x10] sm:$0xff]
        %v249 = vld [vmem:[%s2 + $0x18] sm:$0xff]
        %v250 = vld [vmem:[%s2 + $0x20] sm:$0xff]
        %v251 = vld [vmem:[%s2 + $0x28] sm:$0xff]
        %v252 = vld [vmem:[%s2 + $0x30] sm:$0xff]
        %v253 = vld [vmem:[%s2 + $0x38] sm:$0xff]
        %255 = vset.pattern.permute.xlu0 0
        %256 = vperm.xlu0 %255, %v246
        %v257 = vpop.permute.xlu0 %256
        %260 = vset.pattern.permute.xlu0 0
        %261 = vperm.xlu0 %260, %v247
        %v262 = vpop.permute.xlu0 %261
        %265 = vset.pattern.permute.xlu0 0
        %266 = vperm.xlu0 %265, %v248
        %v267 = vpop.permute.xlu0 %266
        %270 = vset.pattern.permute.xlu0 0
        %271 = vperm.xlu0 %270, %v249
        %v272 = vpop.permute.xlu0 %271
        %275 = vset.pattern.permute.xlu0 0
        %276 = vperm.xlu0 %275, %v250
        %v277 = vpop.permute.xlu0 %276
        %280 = vset.pattern.permute.xlu0 0
        %281 = vperm.xlu0 %280, %v251
        %v282 = vpop.permute.xlu0 %281
        %285 = vset.pattern.permute.xlu0 0
        %286 = vperm.xlu0 %285, %v252
        %v287 = vpop.permute.xlu0 %286
        %290 = vset.pattern.permute.xlu0 0
        %291 = vperm.xlu0 %290, %v253
        %v292 = vpop.permute.xlu0 %291
        %v295 = vlaneseq
        %v296 = vshrl.u32 %v295, 7
        %v297 = vsub.s32 0, %v296
        %v298 = vrot.slane %v244, %v297
        %v299 = vlaneseq
        %v300 = vshrl.u32 %v299, 7
        %v301 = vsub.s32 1, %v300
        %v302 = vrot.slane %v244, %v301
        %v303 = vlaneseq
        %v304 = vshrl.u32 %v303, 7
        %v305 = vsub.s32 2, %v304
        %v306 = vrot.slane %v244, %v305
        %v307 = vlaneseq
        %v308 = vshrl.u32 %v307, 7
        %v309 = vsub.s32 3, %v308
        %v310 = vrot.slane %v244, %v309
        %v315 = vmul.f32 %v257, %v298
        %v316 = vmul.f32 %v257, %v302
        %v317 = vmul.f32 %v257, %v306
        %v318 = vmul.f32 %v257, %v310
        %v319 = vmul.f32 %v262, %v298
        %v320 = vmul.f32 %v262, %v302
        %v321 = vmul.f32 %v262, %v306
        %v322 = vmul.f32 %v262, %v310
        %v323 = vmul.f32 %v267, %v298
        %v324 = vmul.f32 %v267, %v302
        %v325 = vmul.f32 %v267, %v306
        %v326 = vmul.f32 %v267, %v310
        %v327 = vmul.f32 %v272, %v298
        %v328 = vmul.f32 %v272, %v302
        %v329 = vmul.f32 %v272, %v306
        %v330 = vmul.f32 %v272, %v310
        %v331 = vmul.f32 %v277, %v298
        %v332 = vmul.f32 %v277, %v302
        %v333 = vmul.f32 %v277, %v306
        %v334 = vmul.f32 %v277, %v310
        %v335 = vmul.f32 %v282, %v298
        %v336 = vmul.f32 %v282, %v302
        %v337 = vmul.f32 %v282, %v306
        %v338 = vmul.f32 %v282, %v310
        %v339 = vmul.f32 %v287, %v298
        %v340 = vmul.f32 %v287, %v302
        %v341 = vmul.f32 %v287, %v306
        %v342 = vmul.f32 %v287, %v310
        %v343 = vmul.f32 %v292, %v298
        %v344 = vmul.f32 %v292, %v302
        %v345 = vmul.f32 %v292, %v306
        %v346 = vmul.f32 %v292, %v310
        %347 = vset.pattern.permute.xlu0 1
        %348 = vperm.xlu0 %347, %v246
        %v349 = vpop.permute.xlu0 %348
        %351 = vset.pattern.permute.xlu0 1
        %352 = vperm.xlu0 %351, %v247
        %v353 = vpop.permute.xlu0 %352
        %355 = vset.pattern.permute.xlu0 1
        %356 = vperm.xlu0 %355, %v248
        %v357 = vpop.permute.xlu0 %356
        %359 = vset.pattern.permute.xlu0 1
        %360 = vperm.xlu0 %359, %v249
        %v361 = vpop.permute.xlu0 %360
        %363 = vset.pattern.permute.xlu0 1
        %364 = vperm.xlu0 %363, %v250
        %v365 = vpop.permute.xlu0 %364
        %367 = vset.pattern.permute.xlu0 1
        %368 = vperm.xlu0 %367, %v251
        %v369 = vpop.permute.xlu0 %368
        %371 = vset.pattern.permute.xlu0 1
        %372 = vperm.xlu0 %371, %v252
        %v373 = vpop.permute.xlu0 %372
        %375 = vset.pattern.permute.xlu0 1
        %376 = vperm.xlu0 %375, %v253
        %v377 = vpop.permute.xlu0 %376
        %v380 = vlaneseq
        %v381 = vshrl.u32 %v380, 7
        %v382 = vsub.s32 0, %v381
        %v383 = vrot.slane %v245, %v382
        %v384 = vlaneseq
        %v385 = vshrl.u32 %v384, 7
        %v386 = vsub.s32 1, %v385
        %v387 = vrot.slane %v245, %v386
        %v388 = vlaneseq
        %v389 = vshrl.u32 %v388, 7
        %v390 = vsub.s32 2, %v389
        %v391 = vrot.slane %v245, %v390
        %v392 = vlaneseq
        %v393 = vshrl.u32 %v392, 7
        %v394 = vsub.s32 3, %v393
        %v395 = vrot.slane %v245, %v394
        %v400 = vmul.f32 %v349, %v383
        %v401 = vmul.f32 %v349, %v387
        %v402 = vmul.f32 %v349, %v391
        %v403 = vmul.f32 %v349, %v395
        %v404 = vmul.f32 %v353, %v383
        %v405 = vmul.f32 %v353, %v387
        %v406 = vmul.f32 %v353, %v391
        %v407 = vmul.f32 %v353, %v395
        %v408 = vmul.f32 %v357, %v383
        %v409 = vmul.f32 %v357, %v387
        %v410 = vmul.f32 %v357, %v391
        %v411 = vmul.f32 %v357, %v395
        %v412 = vmul.f32 %v361, %v383
        %v413 = vmul.f32 %v361, %v387
        %v414 = vmul.f32 %v361, %v391
        %v415 = vmul.f32 %v361, %v395
        %v416 = vmul.f32 %v365, %v383
        %v417 = vmul.f32 %v365, %v387
        %v418 = vmul.f32 %v365, %v391
        %v419 = vmul.f32 %v365, %v395
        %v420 = vmul.f32 %v369, %v383
        %v421 = vmul.f32 %v369, %v387
        %v422 = vmul.f32 %v369, %v391
        %v423 = vmul.f32 %v369, %v395
        %v424 = vmul.f32 %v373, %v383
        %v425 = vmul.f32 %v373, %v387
        %v426 = vmul.f32 %v373, %v391
        %v427 = vmul.f32 %v373, %v395
        %v428 = vmul.f32 %v377, %v383
        %v429 = vmul.f32 %v377, %v387
        %v430 = vmul.f32 %v377, %v391
        %v431 = vmul.f32 %v377, %v395
        %v432 = vadd.f32 %v315, %v400
        %v433 = vadd.f32 %v316, %v401
        %v434 = vadd.f32 %v317, %v402
        %v435 = vadd.f32 %v318, %v403
        %v436 = vadd.f32 %v319, %v404
        %v437 = vadd.f32 %v320, %v405
        %v438 = vadd.f32 %v321, %v406
        %v439 = vadd.f32 %v322, %v407
        %v440 = vadd.f32 %v323, %v408
        %v441 = vadd.f32 %v324, %v409
        %v442 = vadd.f32 %v325, %v410
        %v443 = vadd.f32 %v326, %v411
        %v444 = vadd.f32 %v327, %v412
        %v445 = vadd.f32 %v328, %v413
        %v446 = vadd.f32 %v329, %v414
        %v447 = vadd.f32 %v330, %v415
        %v448 = vadd.f32 %v331, %v416
        %v449 = vadd.f32 %v332, %v417
        %v450 = vadd.f32 %v333, %v418
        %v451 = vadd.f32 %v334, %v419
        %v452 = vadd.f32 %v335, %v420
        %v453 = vadd.f32 %v336, %v421
        %v454 = vadd.f32 %v337, %v422
        %v455 = vadd.f32 %v338, %v423
        %v456 = vadd.f32 %v339, %v424
        %v457 = vadd.f32 %v340, %v425
        %v458 = vadd.f32 %v341, %v426
        %v459 = vadd.f32 %v342, %v427
        %v460 = vadd.f32 %v343, %v428
        %v461 = vadd.f32 %v344, %v429
        %v462 = vadd.f32 %v345, %v430
        %v463 = vadd.f32 %v346, %v431
        %464 = vset.pattern.permute.xlu0 2
        %465 = vperm.xlu0 %464, %v246
        %v466 = vpop.permute.xlu0 %465
        %468 = vset.pattern.permute.xlu0 2
        %469 = vperm.xlu0 %468, %v247
        %v470 = vpop.permute.xlu0 %469
        %472 = vset.pattern.permute.xlu0 2
        %473 = vperm.xlu0 %472, %v248
        %v474 = vpop.permute.xlu0 %473
        %476 = vset.pattern.permute.xlu0 2
        %477 = vperm.xlu0 %476, %v249
        %v478 = vpop.permute.xlu0 %477
        %480 = vset.pattern.permute.xlu0 2
        %481 = vperm.xlu0 %480, %v250
        %v482 = vpop.permute.xlu0 %481
        %484 = vset.pattern.permute.xlu0 2
        %485 = vperm.xlu0 %484, %v251
        %v486 = vpop.permute.xlu0 %485
        %488 = vset.pattern.permute.xlu0 2
        %489 = vperm.xlu0 %488, %v252
        %v490 = vpop.permute.xlu0 %489
        %492 = vset.pattern.permute.xlu0 2
        %493 = vperm.xlu0 %492, %v253
        %v494 = vpop.permute.xlu0 %493
        %v496 = vadd.f32 %v432, %v466
        %v497 = vadd.f32 %v433, %v466
        %v498 = vadd.f32 %v434, %v466
        %v499 = vadd.f32 %v435, %v466
        %v500 = vadd.f32 %v436, %v470
        %v501 = vadd.f32 %v437, %v470
        %v502 = vadd.f32 %v438, %v470
        %v503 = vadd.f32 %v439, %v470
        %v504 = vadd.f32 %v440, %v474
        %v505 = vadd.f32 %v441, %v474
        %v506 = vadd.f32 %v442, %v474
        %v507 = vadd.f32 %v443, %v474
        %v508 = vadd.f32 %v444, %v478
        %v509 = vadd.f32 %v445, %v478
        %v510 = vadd.f32 %v446, %v478
        %v511 = vadd.f32 %v447, %v478
        %v512 = vadd.f32 %v448, %v482
        %v513 = vadd.f32 %v449, %v482
        %v514 = vadd.f32 %v450, %v482
        %v515 = vadd.f32 %v451, %v482
        %v516 = vadd.f32 %v452, %v486
        %v517 = vadd.f32 %v453, %v486
        %v518 = vadd.f32 %v454, %v486
        %v519 = vadd.f32 %v455, %v486
        %v520 = vadd.f32 %v456, %v490
        %v521 = vadd.f32 %v457, %v490
        %v522 = vadd.f32 %v458, %v490
        %v523 = vadd.f32 %v459, %v490
        %v524 = vadd.f32 %v460, %v494
        %v525 = vadd.f32 %v461, %v494
        %v526 = vadd.f32 %v462, %v494
        %v527 = vadd.f32 %v463, %v494
        %v528 = vtanh.pop %v496
        %v529 = vtanh.pop %v497
        %v530 = vtanh.pop %v498
        %v531 = vtanh.pop %v499
        %v532 = vtanh.pop %v500
        %v533 = vtanh.pop %v501
        %v534 = vtanh.pop %v502
        %v535 = vtanh.pop %v503
        %v536 = vtanh.pop %v504
        %v537 = vtanh.pop %v505
        %v538 = vtanh.pop %v506
        %v539 = vtanh.pop %v507
        %v540 = vtanh.pop %v508
        %v541 = vtanh.pop %v509
        %v542 = vtanh.pop %v510
        %v543 = vtanh.pop %v511
        %v544 = vtanh.pop %v512
        %v545 = vtanh.pop %v513
        %v546 = vtanh.pop %v514
        %v547 = vtanh.pop %v515
        %v548 = vtanh.pop %v516
        %v549 = vtanh.pop %v517
        %v550 = vtanh.pop %v518
        %v551 = vtanh.pop %v519
        %v552 = vtanh.pop %v520
        %v553 = vtanh.pop %v521
        %v554 = vtanh.pop %v522
        %v555 = vtanh.pop %v523
        %v556 = vtanh.pop %v524
        %v557 = vtanh.pop %v525
        %v558 = vtanh.pop %v526
        %v559 = vtanh.pop %v527
        %v560 = vld [vmem:[%s3] sm:$0xff]
        %v561 = vld [vmem:[%s3 + $0x8] sm:$0xff]
        %v562 = vld [vmem:[%s3 + $0x10] sm:$0xff]
        %v563 = vld [vmem:[%s3 + $0x18] sm:$0xff]
        %v564 = vld [vmem:[%s3 + $0x20] sm:$0xff]
        %v565 = vld [vmem:[%s3 + $0x28] sm:$0xff]
        %v566 = vld [vmem:[%s3 + $0x30] sm:$0xff]
        %v567 = vld [vmem:[%s3 + $0x38] sm:$0xff]
        %v568 = vpack.c.bf16 %v561, %v560
        %v569 = vpack.c.bf16 %v563, %v562
        %v570 = vpack.c.bf16 %v565, %v564
        %v571 = vpack.c.bf16 %v567, %v566
        %v572 = vpack.c.bf16 %v532, %v528
        %v573 = vpack.c.bf16 %v533, %v529
        %v574 = vpack.c.bf16 %v534, %v530
        %v575 = vpack.c.bf16 %v535, %v531
        %v576 = vpack.c.bf16 %v540, %v536
        %v577 = vpack.c.bf16 %v541, %v537
        %v578 = vpack.c.bf16 %v542, %v538
        %v579 = vpack.c.bf16 %v543, %v539
        %v580 = vpack.c.bf16 %v548, %v544
        %v581 = vpack.c.bf16 %v549, %v545
        %v582 = vpack.c.bf16 %v550, %v546
        %v583 = vpack.c.bf16 %v551, %v547
        %v584 = vpack.c.bf16 %v556, %v552
        %v585 = vpack.c.bf16 %v557, %v553
        %v586 = vpack.c.bf16 %v558, %v554
        %v587 = vpack.c.bf16 %v559, %v555
        %588 = vset.pattern.permute.xlu0 3
        %589 = vperm.xlu0 %588, %v246
        %v590 = vpop.permute.xlu0 %589
        %592 = vset.pattern.permute.xlu0 3
        %593 = vperm.xlu0 %592, %v247
        %v594 = vpop.permute.xlu0 %593
        %596 = vset.pattern.permute.xlu0 3
        %597 = vperm.xlu0 %596, %v248
        %v598 = vpop.permute.xlu0 %597
        %600 = vset.pattern.permute.xlu0 3
        %601 = vperm.xlu0 %600, %v249
        %v602 = vpop.permute.xlu0 %601
        %604 = vset.pattern.permute.xlu0 3
        %605 = vperm.xlu0 %604, %v250
        %v606 = vpop.permute.xlu0 %605
        %608 = vset.pattern.permute.xlu0 3
        %609 = vperm.xlu0 %608, %v251
        %v610 = vpop.permute.xlu0 %609
        %612 = vset.pattern.permute.xlu0 3
        %613 = vperm.xlu0 %612, %v252
        %v614 = vpop.permute.xlu0 %613
        %616 = vset.pattern.permute.xlu0 3
        %617 = vperm.xlu0 %616, %v253
        %v618 = vpop.permute.xlu0 %617
        %vm620 = vcmask 523264
        %v622 = vsel %vm620, %v568, 0
        %v625 = vsel %vm620, %v569, 0
        %v628 = vsel %vm620, %v570, 0
        %v631 = vsel %vm620, %v571, 0
        %633 = vmatprep.subr.bf16.mxu0 %v573
        %634 = vmatpush1.bf16.msra.mxu0 %v572
        %635 = vmatprep.subr.bf16.mxu0 %v577
        %636 = vmatpush1.bf16.msra.mxu0 %v576
        %637 = vmatprep.subr.bf16.mxu0 %v581
        %638 = vmatpush1.bf16.msra.mxu0 %v580
        %639 = vmatprep.subr.bf16.mxu0 %v585
        %640 = vmatpush1.bf16.msra.mxu0 %v584
        %641 = vmatprep.subr.bf16.mxu0 0
        %642 = vmatpush1.bf16.msra.mxu0 0
        %643 = vmatprep.subr.bf16.mxu0 0
        %644 = vmatpush1.bf16.msra.mxu0 0
        %645 = vmatprep.subr.bf16.mxu0 0
        %646 = vmatpush1.bf16.msra.mxu0 0
        %647 = vmatprep.subr.bf16.mxu0 0
        %648 = vmatpush1.bf16.msra.mxu0 0
        %649 = vmatprep.subr.bf16.mxu0 0
        %650 = vmatpush1.bf16.msra.mxu0 0
        %651 = vmatprep.subr.bf16.mxu0 0
        %652 = vmatpush1.bf16.msra.mxu0 0
        %653 = vmatprep.subr.bf16.mxu0 0
        %654 = vmatpush1.bf16.msra.mxu0 0
        %655 = vmatprep.subr.bf16.mxu0 0
        %656 = vmatpush1.bf16.msra.mxu0 0
        %657 = vmatprep.subr.bf16.mxu0 0
        %658 = vmatpush1.bf16.msra.mxu0 0
        %659 = vmatprep.subr.bf16.mxu0 0
        %660 = vmatpush1.bf16.msra.mxu0 0
        %661 = vmatprep.subr.bf16.mxu0 0
        %662 = vmatpush1.bf16.msra.mxu0 0
        %663 = vmatprep.subr.bf16.mxu0 0
        %664 = vmatpush1.bf16.msra.mxu0 0
        %665 = vmatprep.mubr.bf16.mxu0 0
        %666 = vmatmul.mubr.bf16.gmra.mrb[0].mxu0 %v622
        %v667 = vpop.f32.mrb[0].mxu0
        %v668 = vadd.f32 %v590, %v667
        %v669 = vpop.f32.mrb[0].mxu0
        %v670 = vadd.f32 %v590, %v669
        %v671 = vpop.f32.mrb[0].mxu0
        %v672 = vadd.f32 %v594, %v671
        %v673 = vpop.f32.mrb[0].mxu0
        %v674 = vadd.f32 %v594, %v673
        %675 = vmatprep.mubr.bf16.mxu0 0
        %676 = vmatmul.mubr.bf16.gmra.mrb[0].mxu0 %v625
        %v677 = vpop.f32.mrb[0].mxu0
        %v678 = vadd.f32 %v598, %v677
        %v679 = vpop.f32.mrb[0].mxu0
        %v680 = vadd.f32 %v598, %v679
        %v681 = vpop.f32.mrb[0].mxu0
        %v682 = vadd.f32 %v602, %v681
        %v683 = vpop.f32.mrb[0].mxu0
        %v684 = vadd.f32 %v602, %v683
        %685 = vmatprep.mubr.bf16.mxu0 0
        %686 = vmatmul.mubr.bf16.gmra.mrb[0].mxu0 %v628
        %v687 = vpop.f32.mrb[0].mxu0
        %v688 = vadd.f32 %v606, %v687
        %v689 = vpop.f32.mrb[0].mxu0
        %v690 = vadd.f32 %v606, %v689
        %v691 = vpop.f32.mrb[0].mxu0
        %v692 = vadd.f32 %v610, %v691
        %v693 = vpop.f32.mrb[0].mxu0
        %v694 = vadd.f32 %v610, %v693
        %695 = vmatprep.mubr.bf16.mxu0 0
        %696 = vmatmul.mubr.bf16.gmra.mrb[0].mxu0 %v631
        %v697 = vpop.f32.mrb[0].mxu0
        %v698 = vadd.f32 %v614, %v697
        %v699 = vpop.f32.mrb[0].mxu0
        %v700 = vadd.f32 %v614, %v699
        %v701 = vpop.f32.mrb[0].mxu0
        %v702 = vadd.f32 %v618, %v701
        %v703 = vpop.f32.mrb[0].mxu0
        %v704 = vadd.f32 %v618, %v703
        %705 = vdwg.mxu0
        %706 = vmatprep.subr.bf16.mxu0 %v575
        %707 = vmatpush1.bf16.msra.mxu0 %v574
        %708 = vmatprep.subr.bf16.mxu0 %v579
        %709 = vmatpush1.bf16.msra.mxu0 %v578
        %710 = vmatprep.subr.bf16.mxu0 %v583
        %711 = vmatpush1.bf16.msra.mxu0 %v582
        %712 = vmatprep.subr.bf16.mxu0 %v587
        %713 = vmatpush1.bf16.msra.mxu0 %v586
        %714 = vmatprep.subr.bf16.mxu0 0
        %715 = vmatpush1.bf16.msra.mxu0 0
        %716 = vmatprep.subr.bf16.mxu0 0
        %717 = vmatpush1.bf16.msra.mxu0 0
        %718 = vmatprep.subr.bf16.mxu0 0
        %719 = vmatpush1.bf16.msra.mxu0 0
        %720 = vmatprep.subr.bf16.mxu0 0
        %721 = vmatpush1.bf16.msra.mxu0 0
        %722 = vmatprep.subr.bf16.mxu0 0
        %723 = vmatpush1.bf16.msra.mxu0 0
        %724 = vmatprep.subr.bf16.mxu0 0
        %725 = vmatpush1.bf16.msra.mxu0 0
        %726 = vmatprep.subr.bf16.mxu0 0
        %727 = vmatpush1.bf16.msra.mxu0 0
        %728 = vmatprep.subr.bf16.mxu0 0
        %729 = vmatpush1.bf16.msra.mxu0 0
        %730 = vmatprep.subr.bf16.mxu0 0
        %731 = vmatpush1.bf16.msra.mxu0 0
        %732 = vmatprep.subr.bf16.mxu0 0
        %733 = vmatpush1.bf16.msra.mxu0 0
        %734 = vmatprep.subr.bf16.mxu0 0
        %735 = vmatpush1.bf16.msra.mxu0 0
        %736 = vmatprep.subr.bf16.mxu0 0
        %737 = vmatpush1.bf16.msra.mxu0 0
        %738 = vmatprep.mubr.bf16.mxu0 0
        %739 = vmatmul.mubr.bf16.gmra.mrb[0].mxu0 %v622
        %v740 = vpop.f32.mrb[0].mxu0
        %v741 = vadd.f32 %v590, %v740
        %v742 = vpop.f32.mrb[0].mxu0
        %v743 = vadd.f32 %v590, %v742
        %v744 = vpop.f32.mrb[0].mxu0
        %v745 = vadd.f32 %v594, %v744
        %v746 = vpop.f32.mrb[0].mxu0
        %v747 = vadd.f32 %v594, %v746
        %748 = vmatprep.mubr.bf16.mxu0 0
        %749 = vmatmul.mubr.bf16.gmra.mrb[0].mxu0 %v625
        %v750 = vpop.f32.mrb[0].mxu0
        %v751 = vadd.f32 %v598, %v750
        %v752 = vpop.f32.mrb[0].mxu0
        %v753 = vadd.f32 %v598, %v752
        %v754 = vpop.f32.mrb[0].mxu0
        %v755 = vadd.f32 %v602, %v754
        %v756 = vpop.f32.mrb[0].mxu0
        %v757 = vadd.f32 %v602, %v756
        %758 = vmatprep.mubr.bf16.mxu0 0
        %759 = vmatmul.mubr.bf16.gmra.mrb[0].mxu0 %v628
        %v760 = vpop.f32.mrb[0].mxu0
        %v761 = vadd.f32 %v606, %v760
        %v762 = vpop.f32.mrb[0].mxu0
        %v763 = vadd.f32 %v606, %v762
        %v764 = vpop.f32.mrb[0].mxu0
        %v765 = vadd.f32 %v610, %v764
        %v766 = vpop.f32.mrb[0].mxu0
        %v767 = vadd.f32 %v610, %v766
        %768 = vmatprep.mubr.bf16.mxu0 0
        %769 = vmatmul.mubr.bf16.gmra.mrb[0].mxu0 %v631
        %v770 = vpop.f32.mrb[0].mxu0
        %v771 = vadd.f32 %v614, %v770
        %v772 = vpop.f32.mrb[0].mxu0
        %v773 = vadd.f32 %v614, %v772
        %v774 = vpop.f32.mrb[0].mxu0
        %v775 = vadd.f32 %v618, %v774
        %v776 = vpop.f32.mrb[0].mxu0
        %v777 = vadd.f32 %v618, %v776
        %778 = vdwg.mxu0
        %v779 = vtanh.pop %v668
        %v780 = vtanh.pop %v670
        %v781 = vtanh.pop %v741
        %v782 = vtanh.pop %v743
        %v783 = vtanh.pop %v672
        %v784 = vtanh.pop %v674
        %v785 = vtanh.pop %v745
        %v786 = vtanh.pop %v747
        %v787 = vtanh.pop %v678
        %v788 = vtanh.pop %v680
        %v789 = vtanh.pop %v751
        %v790 = vtanh.pop %v753
        %v791 = vtanh.pop %v682
        %v792 = vtanh.pop %v684
        %v793 = vtanh.pop %v755
        %v794 = vtanh.pop %v757
        %v795 = vtanh.pop %v688
        %v796 = vtanh.pop %v690
        %v797 = vtanh.pop %v761
        %v798 = vtanh.pop %v763
        %v799 = vtanh.pop %v692
        %v800 = vtanh.pop %v694
        %v801 = vtanh.pop %v765
        %v802 = vtanh.pop %v767
        %v803 = vtanh.pop %v698
        %v804 = vtanh.pop %v700
        %v805 = vtanh.pop %v771
        %v806 = vtanh.pop %v773
        %v807 = vtanh.pop %v702
        %v808 = vtanh.pop %v704
        %v809 = vtanh.pop %v775
        %v810 = vtanh.pop %v777
        %811 = vset.pattern.permute.xlu0 4
        %812 = vperm.xlu0 %811, %v246
        %v813 = vpop.permute.xlu0 %812
        %815 = vset.pattern.permute.xlu0 4
        %816 = vperm.xlu0 %815, %v247
        %v817 = vpop.permute.xlu0 %816
        %819 = vset.pattern.permute.xlu0 4
        %820 = vperm.xlu0 %819, %v248
        %v821 = vpop.permute.xlu0 %820
        %823 = vset.pattern.permute.xlu0 4
        %824 = vperm.xlu0 %823, %v249
        %v825 = vpop.permute.xlu0 %824
        %827 = vset.pattern.permute.xlu0 4
        %828 = vperm.xlu0 %827, %v250
        %v829 = vpop.permute.xlu0 %828
        %831 = vset.pattern.permute.xlu0 4
        %832 = vperm.xlu0 %831, %v251
        %v833 = vpop.permute.xlu0 %832
        %835 = vset.pattern.permute.xlu0 4
        %836 = vperm.xlu0 %835, %v252
        %v837 = vpop.permute.xlu0 %836
        %839 = vset.pattern.permute.xlu0 4
        %840 = vperm.xlu0 %839, %v253
        %v841 = vpop.permute.xlu0 %840
        %v843 = vmul.f32 %v813, %v779
        %v844 = vmul.f32 %v813, %v780
        %v845 = vmul.f32 %v813, %v781
        %v846 = vmul.f32 %v813, %v782
        %v847 = vmul.f32 %v817, %v783
        %v848 = vmul.f32 %v817, %v784
        %v849 = vmul.f32 %v817, %v785
        %v850 = vmul.f32 %v817, %v786
        %v851 = vmul.f32 %v821, %v787
        %v852 = vmul.f32 %v821, %v788
        %v853 = vmul.f32 %v821, %v789
        %v854 = vmul.f32 %v821, %v790
        %v855 = vmul.f32 %v825, %v791
        %v856 = vmul.f32 %v825, %v792
        %v857 = vmul.f32 %v825, %v793
        %v858 = vmul.f32 %v825, %v794
        %v859 = vmul.f32 %v829, %v795
        %v860 = vmul.f32 %v829, %v796
        %v861 = vmul.f32 %v829, %v797
        %v862 = vmul.f32 %v829, %v798
        %v863 = vmul.f32 %v833, %v799
        %v864 = vmul.f32 %v833, %v800
        %v865 = vmul.f32 %v833, %v801
        %v866 = vmul.f32 %v833, %v802
        %v867 = vmul.f32 %v837, %v803
        %v868 = vmul.f32 %v837, %v804
        %v869 = vmul.f32 %v837, %v805
        %v870 = vmul.f32 %v837, %v806
        %v871 = vmul.f32 %v841, %v807
        %v872 = vmul.f32 %v841, %v808
        %v873 = vmul.f32 %v841, %v809
        %v874 = vmul.f32 %v841, %v810
        %v875 = vadd.f32 %v843, %v847
        %v876 = vadd.f32 %v875, %v851
        %v877 = vadd.f32 %v876, %v855
        %v878 = vadd.f32 %v877, %v859
        %v879 = vadd.f32 %v878, %v863
        %v880 = vadd.f32 %v879, %v867
        %v881 = vadd.f32 %v880, %v871
        %v882 = vrot.slane %v881, 4
        %v883 = vadd.f32 %v881, %v882
        %v884 = vrot.slane %v883, 2
        %v885 = vadd.f32 %v883, %v884
        %v886 = vrot.slane %v885, 1
        %v887 = vadd.f32 %v885, %v886
        %v888 = vadd.f32 %v844, %v848
        %v889 = vadd.f32 %v888, %v852
        %v890 = vadd.f32 %v889, %v856
        %v891 = vadd.f32 %v890, %v860
        %v892 = vadd.f32 %v891, %v864
        %v893 = vadd.f32 %v892, %v868
        %v894 = vadd.f32 %v893, %v872
        %v895 = vrot.slane %v894, 4
        %v896 = vadd.f32 %v894, %v895
        %v897 = vrot.slane %v896, 2
        %v898 = vadd.f32 %v896, %v897
        %v899 = vrot.slane %v898, 1
        %v900 = vadd.f32 %v898, %v899
        %v901 = vadd.f32 %v845, %v849
        %v902 = vadd.f32 %v901, %v853
        %v903 = vadd.f32 %v902, %v857
        %v904 = vadd.f32 %v903, %v861
        %v905 = vadd.f32 %v904, %v865
        %v906 = vadd.f32 %v905, %v869
        %v907 = vadd.f32 %v906, %v873
        %v908 = vrot.slane %v907, 4
        %v909 = vadd.f32 %v907, %v908
        %v910 = vrot.slane %v909, 2
        %v911 = vadd.f32 %v909, %v910
        %v912 = vrot.slane %v911, 1
        %v913 = vadd.f32 %v911, %v912
        %v914 = vadd.f32 %v846, %v850
        %v915 = vadd.f32 %v914, %v854
        %v916 = vadd.f32 %v915, %v858
        %v917 = vadd.f32 %v916, %v862
        %v918 = vadd.f32 %v917, %v866
        %v919 = vadd.f32 %v918, %v870
        %v920 = vadd.f32 %v919, %v874
        %v921 = vrot.slane %v920, 4
        %v922 = vadd.f32 %v920, %v921
        %v923 = vrot.slane %v922, 2
        %v924 = vadd.f32 %v922, %v923
        %v925 = vrot.slane %v924, 1
        %v926 = vadd.f32 %v924, %v925
        %s927 = sld [smem:[#allocation2]]
        %v928 = vstv %s927
        %v929 = vadd.f32 %v887, %v928
        %v930 = vadd.f32 %v900, %v928
        %v931 = vadd.f32 %v913, %v928
        %v932 = vadd.f32 %v926, %v928
        %v933 = vsub.f32 1.0, %v244
        %v934 = vmul.f32 %v244, %v933
        %v935 = vmul.f32 %v934, %v245
        %v940 = vcombine.low %v929, %v930
        %v941 = vcombine.low %v931, %v932
        %v943 = vunpack.c.l.s4 1966171168
        %v944 = vunpack.c.0.s8 %v943
        %v945 = vlaneseq
        %v946 = vshrl.u32 %v945, 7
        %v947 = vsub.s32 %v944, %v946
        %v948 = vrot.slane %v940, %v947
        %v950 = vunpack.c.l.s4 1966171168
        %v951 = vunpack.c.0.s8 %v950
        %v952 = vlaneseq
        %v953 = vshrl.u32 %v952, 7
        %v954 = vsub.s32 %v951, %v953
        %v955 = vrot.slane %v941, %v954
        %v956 = vcombine.low %v948, %v955
        %v958 = vunpack.c.l.s4 1966171168
        %v959 = vunpack.c.0.s8 %v958
        %v960 = vlaneseq
        %v961 = vshrl.u32 %v960, 7
        %v962 = vsub.s32 %v959, %v961
        %v963 = vrot.slane %v956, %v962
        %v965 = vmul.f32 %v935, %v963
        %v966 = vsub.f32 1.0, %v245
        %v967 = vmul.f32 %v244, 3.1415927
        %v968 = vand.u32 2147483647, %v967
        %vm969 = vcmp.le.f32.partialorder %v968, 0.7853982
        %vm970 = vcmp.lt.s32.totalorder %v967, 0
        %v971 = vand.u32 %v967, 2139095040
        %v972 = vshrl.u32 %v971, 23
        %v973 = vsub.s32 %v972, 127
        %v974 = vand.u32 2147483647, %v967
        %v975 = vand.u32 %v974, 8388607
        %v976 = vor.u32 %v975, 8388608
        %v977 = vsub.s32 0, %v976
        %v978 = vadd.s32 %v973, 1
        %vm979 = vcmp.gt.s32.totalorder %v978, 0
        %v980 = vsel %vm979, %v978, 0
        %v981 = vshrl.u32 %v980, 5
        %v982 = vand.u32 %v980, 31
        %v983 = vsub.s32 32, %v982
        %v984 = vshrl.u32 683565275, %v983
        %v985 = vshll.u32 683565275, %v982
        %v986 = vshrl.u32 2475754826, %v983
        %v987 = vor.u32 %v985, %v986
        %v988 = vshll.u32 2475754826, %v982
        %v989 = vshrl.u32 2131351028, %v983
        %v990 = vor.u32 %v988, %v989
        %v991 = vshll.u32 2131351028, %v982
        %v992 = vshrl.u32 2102212464, %v983
        %v993 = vor.u32 %v991, %v992
        %v994 = vshll.u32 2102212464, %v982
        %v995 = vshrl.u32 920167782, %v983
        %v996 = vor.u32 %v994, %v995
        %v997 = vshll.u32 920167782, %v982
        %v998 = vshrl.u32 1326507024, %v983
        %v999 = vor.u32 %v997, %v998
        %vm1000 = vcmp.lt.s32.totalorder %v981, 1
        %vm1001 = vcmp.lt.s32.totalorder %v981, 2
        %vm1002 = vcmp.lt.s32.totalorder %v981, 3
        %vm1003 = vcmp.lt.s32.totalorder %v981, 4
        %v1004 = vsel %vm1000, %v984, %v987
        %v1005 = vsel %vm1003, %v993, 2102212464
        %v1006 = vsel %vm1002, %v990, %v1005
        %v1007 = vsel %vm1001, %v1004, %v1006
        %v1008 = vsel %vm1000, %v987, %v990
        %v1009 = vsel %vm1003, %v996, 920167782
        %v1010 = vsel %vm1002, %v993, %v1009
        %v1011 = vsel %vm1001, %v1008, %v1010
        %v1012 = vsel %vm1000, %v990, %v993
        %v1013 = vsel %vm1003, %v999, 1326507024
        %v1014 = vsel %vm1002, %v996, %v1013
        %v1015 = vsel %vm1001, %v1012, %v1014
        %v1016 = vshll.u32 %v976, 8
        %v1017 = vmul.u32.u64.compose %v1016, %v1015
        %v1018 = vextract.low.u32 %v1017
        %v1019 = vextract.high.u32 %v1017
        %v1020 = vmul.u32.u64.compose %v1016, %v1011
        %v1021 = vextract.low.u32 %v1020
        %v1022 = vextract.high.u32 %v1020
        %v1023 = vmul.u32 %v1016, %v1007
        %v1024 = vadd.s32 %v1019, %v1021
        %vm1025 = vc.u32 %v1019, %v1021
        %v1026 = vadd.s32 %v1022, 1
        %v1027 = vsel %vm1025, %v1026, %v1022
        %v1028 = vadd.s32 %v1023, %v1027
        %v1029 = vadd.s32 %v1028, 536870912
        %v1030 = vshrl.u32 %v1029, 30
        %v1031 = vshll.u32 %v1030, 30
        %v1032 = vsub.s32 %v1028, %v1031
        %vm1033 = vcmp.lt.s32.totalorder %v1032, 0
        %v1034 = vsub.s32 0, %v1032
        %v1035 = vsel %vm1033, %v1034, %v1032
        %v1036 = vclz %v1035
        %v1037 = vsub.s32 %v1036, 2
        %vm1038 = vcmp.gt.s32.totalorder 0, %v1037
        %v1039 = vsel %vm1038, 0, %v1037
        %v1040 = vsub.s32 32, %v1039
        %v1041 = vshll.u32 %v1032, %v1039
        %v1042 = vshrl.u32 %v1024, %v1040
        %v1043 = vor.u32 %v1041, %v1042
        %v1044 = vsub.s32 4294967266, %v1039
        %v1045 = vadd.s32 %v1044, 127
        %v1046 = vshll.u32 %v1045, 23
        %v1047 = vor.u32 4788187, %v1046
        %v1048 = vand.u32 2147483647, %v1047
        %v1050 = vcvt.s32.f32 %v1043
        %v1051 = vmul.f32 %v1050, %v1048
        %v1052 = vxor.u32 %v1051, 2147483648
        %v1053 = vsel %vm970, %v1052, %v1051
        %v1054 = vsub.s32 4, %v1030
        %v1055 = vsel %vm970, %v1054, %v1030
        %v1056 = vsel %vm969, %v967, %v1053
        %v1057 = vsel %vm969, 0, %v1055
        %v1058 = vcosq.f32.pop %v1056
        %v1059 = vsinq.f32.pop %v1056
        %vm1060 = vweird.f32 %v967
        %v1061 = vadd.s32 %v1057, 3
        %v1062 = vand.u32 %v1061, 3
        %vm1063 = vcmp.lt.s32.totalorder %v1062, 2
        %vm1064 = vcmp.eq.s32.totalorder %v1062, 0
        %v1065 = vxor.u32 %v1059, 2147483648
        %v1066 = vsel %vm1064, %v1058, %v1065
        %vm1067 = vcmp.eq.s32.totalorder %v1062, 2
        %v1068 = vxor.u32 %v1058, 2147483648
        %v1069 = vsel %vm1067, %v1068, %v1059
        %v1070 = vsel %vm1063, %v1066, %v1069
        %v1071 = vsel %vm1060, nan, %v1070
        %v1072 = vmul.f32 %v966, %v1071
        %v1073 = vadd.f32 %v965, %v1072
        %v1074 = vlaneseq
        %vm1075 = vcmp.ge.s32.totalorder %v1074, 0
        %vm1076 = vcmp.lt.s32.totalorder %v1074, 512
        %vm1077 = vmand %vm1075, %vm1076
        %1078 = vst.msk [vmem:[%s231] sm:$0xf] %vm1077, %v1073
        %s1079 = sand.u32 %s143, 1
        %s1080 = scalar_lea.sflag [#allocation4], %s1079
        %s1081 = sand.u32 %s143, 1
        %s1082 = smul.addr %s1081, 4
        %s1083 = scalar_lea.vmem [#allocation3], %s1082
        // Predicated region
        $region41: #{tpu_custom_call.1} parent=39 // pred_check
          %p1084 = pneg %p153
        $region42: #{tpu_custom_call.1} parent=39 // pred_check_branch
          %1086 = sbr.rel (%p1084) target = $region44
        $region43: #{tpu_custom_call.1} parent=39 // pred_region
          %s1087 = smul.u32 4, %s20
          %s1089 = ssub.s32 64, 64
          %1090 = vsyncadd %s1080, %s1089
          %s1091 = smul.addr %s1087, 16
          %s1092 = scalar_lea.hbm %s5, %s1091
          %s1094 = sshll.u32 %s1083, 4
          %s1095 = int_to_ptr.vmem [resolvable:$true] %s1094
          %1097 = dma.vmem_to_hbm [thread:$0]  %s1095, 64, %s1092, %s1080
        $region44: #{tpu_custom_call.1} parent=39 // pred_fallthru
          _
      $region40: #{tpu_custom_call.1} parent=5 // pred_fallthru
        _
      %p1098 = scmp.le.s32.totalorder 2, %s15
      // Predicated region
      $region45: #{tpu_custom_call.1} parent=5 // pred_check
        %p1099 = pneg %p1098
      $region46: #{tpu_custom_call.1} parent=5 // pred_check_branch
        %1101 = sbr.rel (%p1099) target = $region48
      $region47: #{tpu_custom_call.1} parent=5 // pred_region
        %s1102 = ssub.s32 %s15, 2
        // Predicated region
        $region49: #{tpu_custom_call.1} parent=47 // pred_check
          %p1103 = pneg %p159
        $region50: #{tpu_custom_call.1} parent=47 // pred_check_branch
          %1105 = sbr.rel (%p1103) target = $region52
        $region51: #{tpu_custom_call.1} parent=47 // pred_region
          %s1106 = sand.u32 %s144, 1
          %s1107 = scalar_lea.sflag [#allocation4], %s1106
          %s1108 = sand.u32 %s144, 1
          %s1109 = smul.addr %s1108, 4
          %s1110 = scalar_lea.vmem [#allocation3], %s1109
          %1111 = dma.done %s1107, 64
        $region52: #{tpu_custom_call.1} parent=47 // pred_fallthru
          _
      $region48: #{tpu_custom_call.1} parent=5 // pred_fallthru
        _
    $region6: #{tpu_custom_call.1} parent=1 // loop_footer
      %s19 = sadd.s32 1, %s15
    $region7: #{tpu_custom_call.1} parent=1 // loop_footer_branch
      %14 = sbr.rel target = $region3
    $region8: #{tpu_custom_call.1} parent=1 // loop_exit
      _
    %1112 = vsyncpa [#allocation4], 1
    %s1113 = scalar_lea.sflag [#allocation4], 1
    %1114 = vsyncpa %s1113, 1

</llo_original>
